<compile_context>
chip_gen: v5e
topology: v5e:2x2
jax: 0.10.0
libtpu: 0.0.40
codegen_flags: <defaults>
</compile_context>

<pallas_src>
import functools

import jax
import jax.numpy as jnp
from jax import lax
from jax.experimental import pallas as pl
from jax.experimental.pallas import tpu as pltpu


def _round_up(x, m):
    return (x + m - 1) // m * m


def _seg_loss_kernel(logits_ref, labels_ref, out_ref, acc_ref, *,
                     ignore_index, chunk, n_chunks):
    """One grid step: reduce a (C, tile) logits tile / (1, tile) labels tile.

    acc_ref: (5, C, 128) f32 VMEM scratch, resident across the whole grid.
      slab 0: sum_pix p * onehot_masked            (dice intersection)
      slab 1: sum_pix (p * valid + onehot_masked)  (dice cardinality)
      slab 2: sum_pix onehot_masked                (dice per-class true count)
      slab 3: sum_pix logp * onehot_masked         (-> nll sum, negated outside)
      slab 4: sum_pix logp * valid                 (-> smooth sum, negated outside)
    out_ref: (5, C, 128) f32, written once on the last grid step (lane-dense).
    """
    first = jnp.logical_and(pl.program_id(0) == 0, pl.program_id(1) == 0)
    last = jnp.logical_and(pl.program_id(0) == pl.num_programs(0) - 1,
                           pl.program_id(1) == pl.num_programs(1) - 1)

    @pl.when(first)
    def _():
        acc_ref[...] = jnp.zeros_like(acc_ref)

    C = logits_ref.shape[0]
    n_groups = chunk // 128

    def _fold(x):
        # (C, chunk) -> (C, 128): sum 128-lane groups. Static lane slices at
        # multiples of 128 select whole vregs -> pure VPU adds, no XLU.
        r = x[:, 0:128]
        for g in range(1, n_groups):
            r = r + x[:, g * 128:(g + 1) * 128]
        return r

    def chunk_body(c, carry):
        off = pl.multiple_of(c * chunk, chunk)
        lb = logits_ref[:, pl.ds(off, chunk)].astype(jnp.float32)  # (C, chunk)
        yb = labels_ref[:, pl.ds(off, chunk)]                      # (1, chunk)

        valid = yb != ignore_index                                 # (1, chunk)
        validf = valid.astype(jnp.float32)
        tgt = jnp.where(valid, yb, 0)                              # (1, chunk)

        # log-softmax over channels; exp computed ONCE, denom via EUP reciprocal
        m = jnp.max(lb, axis=0, keepdims=True)                     # (1, chunk)
        z = lb - m
        e = jnp.exp(z)                                             # (C, chunk)
        sum_e = jnp.sum(e, axis=0, keepdims=True)                  # (1, chunk)
        logp = z - jnp.log(sum_e)                                  # (C, chunk)
        p = e * pl.reciprocal(sum_e, approx=True)                  # softmax

        cls = lax.broadcasted_iota(jnp.int32, (C, chunk), 0)
        ohm = jnp.logical_and(cls == tgt, valid).astype(jnp.float32)  # masked 1-hot

        pm = p * validf
        acc_ref[0] = acc_ref[0] + _fold(p * ohm)          # intersection
        acc_ref[1] = acc_ref[1] + _fold(pm + ohm)         # cardinality
        acc_ref[2] = acc_ref[2] + _fold(ohm)              # true count / class
        acc_ref[3] = acc_ref[3] + _fold(logp * ohm)       # (-) nll sum
        acc_ref[4] = acc_ref[4] + _fold(logp * validf)    # (-) smooth sum
        return carry

    lax.fori_loop(0, n_chunks, chunk_body, 0, unroll=True)

    @pl.when(last)
    def _():
        out_ref[...] = acc_ref[...]


def segmentation_loss(logits, labels, *, ignore_index=255,
                      smooth_factor=0.05, dice_smooth=0.05, dice_eps=1e-7):
    """Eval path of SegmentationLoss.

    logits: (N, C, H, W) float ; labels: (N, H, W) int (ignore = 255).
    """
    N, C, H, W = logits.shape
    HW = H * W

    # ---- tile-size selection: big DMA tiles, bounded-vreg inner chunks -------
    chunk = 512 if C <= 8 else 256        # compute sub-chunk (lanes)
    target_tile = 2048                    # DMA tile (lanes) for large images
    if HW <= chunk:
        tile = _round_up(HW, 128)
        chunk = tile
    else:
        tile = min(target_tile, _round_up(HW, chunk))
    n_chunks = tile // chunk
    HWp = _round_up(HW, tile)

    # ---- layout glue: free reshapes (no transpose); pad pixel axis only ------
    x = logits.reshape(N, C, HW).astype(jnp.float32)
    y = labels.reshape(N, 1, HW).astype(jnp.int32)
    if HWp != HW:
        x = jnp.pad(x, ((0, 0), (0, 0), (0, HWp - HW)))
        y = jnp.pad(y, ((0, 0), (0, 0), (0, HWp - HW)),
                    constant_values=ignore_index)   # padded pixels contribute 0

    grid = (N, HWp // tile)
    kernel = functools.partial(_seg_loss_kernel, ignore_index=ignore_index,
                               chunk=chunk, n_chunks=n_chunks)

    stats = pl.pallas_call(
        kernel,
        out_shape=jax.ShapeDtypeStruct((5, C, 128), jnp.float32),
        grid_spec=pltpu.PrefetchScalarGridSpec(
            num_scalar_prefetch=0,
            grid=grid,
            in_specs=[
                pl.BlockSpec((pl.Squeezed(), C, tile), lambda n, i: (n, 0, i)),
                pl.BlockSpec((pl.Squeezed(), 1, tile), lambda n, i: (n, 0, i)),
            ],
            out_specs=pl.BlockSpec((5, C, 128), lambda n, i: (0, 0, 0)),
            scratch_shapes=[pltpu.VMEM((5, C, 128), jnp.float32)],
        ),
        compiler_params=pltpu.CompilerParams(
            dimension_semantics=("arbitrary", "arbitrary")),
        # TODO(synk): on v7x, add a leading "parallel" axis of size 2 with
        # per-core accumulator slabs to use both TensorCores.
    )(x, y)

    # ---- tiny epilogue: final cross-lane / class reductions in plain JAX -----
    inter = jnp.sum(stats[0], axis=-1)              # (C,)
    card = jnp.sum(stats[1], axis=-1)
    tsum = jnp.sum(stats[2], axis=-1)
    sum_nll = -jnp.sum(stats[3])
    sum_smooth = -jnp.sum(stats[4])

    # SoftCrossEntropyLoss: mean over ALL original pixels (ignored/pad give 0)
    n_pix = jnp.float32(N * HW)
    sce = ((1.0 - smooth_factor) * sum_nll / n_pix
           + (smooth_factor / C) * sum_smooth / n_pix)

    # DiceLoss (multiclass, dims=(0, 2)): per-class score, masked mean
    score = (2.0 * inter + dice_smooth) / jnp.maximum(card + dice_smooth, dice_eps)
    dice = jnp.mean((1.0 - score) * (tsum > 0).astype(jnp.float32))

    return sce + dice


def _reference_loss(logits, labels, *, ignore_index=255,
                    smooth_factor=0.05, dice_smooth=0.05, dice_eps=1e-7):
    """Pure-JAX reference mirroring the PyTorch forward (eval path)."""
    N, C, H, W = logits.shape
    logp = jax.nn.log_softmax(logits.astype(jnp.float32), axis=1)
    valid = labels != ignore_index
    tgt = jnp.where(valid, labels, 0).astype(jnp.int32)
    logp_m = jnp.where(valid[:, None], logp, 0.0)

    nll = -jnp.take_along_axis(logp_m, tgt[:, None], axis=1)        # (N,1,H,W)
    smooth = -jnp.sum(logp_m, axis=1, keepdims=True)                # (N,1,H,W)
    sce = (1.0 - smooth_factor) * nll.mean() + (smooth_factor / C) * smooth.mean()

    p = jnp.exp(logp) * valid[:, None]
    oh = jax.nn.one_hot(tgt, C, axis=1) * valid[:, None]
    inter = jnp.sum(p * oh, axis=(0, 2, 3))
    card = jnp.sum(p + oh, axis=(0, 2, 3))
    score = (2.0 * inter + dice_smooth) / jnp.maximum(card + dice_smooth, dice_eps)
    dice = jnp.mean((1.0 - score) * (jnp.sum(oh, axis=(0, 2, 3)) > 0))
    return sce + dice


if __name__ == "__main__":
    keys = jax.random.split(jax.random.PRNGKey(0), 6)

    # Case 1: canonical small shape (HW already a multiple of the lane tile).
    N, C, H, W = 2, 4, 16, 16
    logits = jax.random.normal(keys[0], (N, C, H, W), dtype=jnp.float32)
    labels = jax.random.randint(keys[1], (N, H, W), 0, C, dtype=jnp.int32)
    labels = jnp.where(jax.random.uniform(keys[2], (N, H, W)) < 0.1,
                       jnp.int32(255), labels)
    out = jax.block_until_ready(segmentation_loss(logits, labels))
    ref = jax.block_until_ready(_reference_loss(logits, labels))
    if not bool(jnp.allclose(out, ref, rtol=2e-3, atol=2e-3)):
        raise AssertionError(f"case1 mismatch: pallas={out}, ref={ref}")

    # Case 2: ragged pixel count -> exercises pixel padding + multi-chunk loop.
    N2, C2, H2, W2 = 2, 4, 20, 36      # HW = 720 -> tile 1024, 2 inner chunks
    logits2 = jax.random.normal(keys[3], (N2, C2, H2, W2), dtype=jnp.float32)
    labels2 = jax.random.randint(keys[4], (N2, H2, W2), 0, C2, dtype=jnp.int32)
    labels2 = jnp.where(jax.random.uniform(keys[5], (N2, H2, W2)) < 0.1,
                        jnp.int32(255), labels2)
    out2 = jax.block_until_ready(segmentation_loss(logits2, labels2))
    ref2 = jax.block_until_ready(_reference_loss(logits2, labels2))
    if not bool(jnp.allclose(out2, ref2, rtol=2e-3, atol=2e-3)):
        raise AssertionError(f"case2 mismatch: pallas={out2}, ref={ref2}")

    print("KERNEL_OK")
</pallas_src>

<mosaic_0001>
module attributes {stable_mosaic.version = 11 : i64} {
  func.func @_seg_loss_kernel(%arg0: i32, %arg1: i32, %arg2: memref<1x4x256xf32, #tpu.memory_space<vmem>>, %arg3: memref<1x1x256xi32, #tpu.memory_space<vmem>>, %arg4: memref<5x4x128xf32, #tpu.memory_space<vmem>>, %arg5: memref<5x4x128xf32, #tpu.memory_space<vmem>>) attributes {dimension_semantics = [#tpu.dimension_semantics<arbitrary>, #tpu.dimension_semantics<arbitrary>], iteration_bounds = array<i64: 2, 1>, scalar_prefetch = 0 : i64, scratch_operands = 1 : i64, tpu.core_type = #tpu.core_type<tc>, window_params = [{transform_indices = @transform_0, window_bounds = array<i64: 1, 4, 256>}, {transform_indices = @transform_1, window_bounds = array<i64: 1, 1, 256>}, {pipeline_mode = #tpu.pipeline_mode<synchronous>, transform_indices = @transform_2, window_bounds = array<i64: 5, 4, 128>}]} {
    %c0_i32 = arith.constant 0 : i32
    %0 = arith.cmpi eq, %arg0, %c0_i32 : i32
    %c0_i32_0 = arith.constant 0 : i32
    %1 = arith.cmpi eq, %arg1, %c0_i32_0 : i32
    %2 = arith.andi %0, %1 : i1
    %c1_i32 = arith.constant 1 : i32
    %3 = arith.cmpi eq, %arg0, %c1_i32 : i32
    %c0_i32_1 = arith.constant 0 : i32
    %4 = arith.cmpi eq, %arg1, %c0_i32_1 : i32
    %5 = arith.andi %3, %4 : i1
    %6 = arith.extui %2 : i1 to i32
    %c0_i32_2 = arith.constant 0 : i32
    %7 = arith.cmpi ne, %6, %c0_i32_2 : i32
    scf.if %7 {
      %cst_37 = arith.constant 0.000000e+00 : f32
      %96 = vector.broadcast %cst_37 : f32 to vector<5x4x128xf32>
      %c0_38 = arith.constant 0 : index
      %c0_39 = arith.constant 0 : index
      %c0_40 = arith.constant 0 : index
      %97 = vector.load %arg5[%c0_38, %c0_39, %c0_40] : memref<5x4x128xf32, #tpu.memory_space<vmem>>, vector<5x4x128xf32>
      tpu.vector_store %arg5[%c0_38, %c0_39, %c0_40], %96 {strides = array<i32>} : memref<5x4x128xf32, #tpu.memory_space<vmem>>, vector<5x4x128xf32>,
    } else {
    }
    %c0_i32_3 = arith.constant 0 : i32
    %c256_i32 = arith.constant 256 : i32
    %8 = arith.muli %c0_i32_3, %c256_i32 : i32
    %9 = tpu.assume_multiple %8, 256 : i32
    %c0 = arith.constant 0 : index
    %c0_4 = arith.constant 0 : index
    %10 = arith.index_cast %9 : i32 to index
    %11 = vector.load %arg2[%c0, %c0_4, %10] : memref<1x4x256xf32, #tpu.memory_space<vmem>>, vector<1x4x256xf32>
    %12 = vector.shape_cast %11 : vector<1x4x256xf32> to vector<4x256xf32>
    %c0_5 = arith.constant 0 : index
    %c0_6 = arith.constant 0 : index
    %13 = arith.index_cast %9 : i32 to index
    %14 = vector.load %arg3[%c0_5, %c0_6, %13] : memref<1x1x256xi32, #tpu.memory_space<vmem>>, vector<1x1x256xi32>
    %15 = vector.shape_cast %14 : vector<1x1x256xi32> to vector<1x256xi32>
    %c255_i32 = arith.constant 255 : i32
    %16 = vector.broadcast %c255_i32 : i32 to vector<1x256xi32>
    %17 = arith.cmpi ne, %15, %16 : vector<1x256xi32>
    %18 = arith.extui %17 : vector<1x256xi1> to vector<1x256xi32>
    %19 = arith.sitofp %18 : vector<1x256xi32> to vector<1x256xf32>
    %c0_i32_7 = arith.constant 0 : i32
    %20 = vector.broadcast %c0_i32_7 : i32 to vector<1x256xi32>
    %21 = arith.select %17, %15, %20 : vector<1x256xi1>, vector<1x256xi32>
    %cst = arith.constant dense<0xFF800000> : vector<256xf32>
    %22 = vector.multi_reduction <maximumf>, %12, %cst [0] : vector<4x256xf32> to vector<256xf32>
    %23 = vector.shape_cast %22 : vector<256xf32> to vector<1x256xf32>
    %24 = vector.broadcast %23 : vector<1x256xf32> to vector<4x256xf32>
    %25 = arith.subf %12, %24 : vector<4x256xf32>
    %26 = math.exp %25 : vector<4x256xf32>
    %cst_8 = arith.constant dense<0.000000e+00> : vector<256xf32>
    %27 = vector.multi_reduction <add>, %26, %cst_8 [0] : vector<4x256xf32> to vector<256xf32>
    %28 = vector.shape_cast %27 : vector<256xf32> to vector<1x256xf32>
    %29 = math.log %28 : vector<1x256xf32>
    %30 = vector.broadcast %29 : vector<1x256xf32> to vector<4x256xf32>
    %31 = arith.subf %25, %30 : vector<4x256xf32>
    %32 = tpu.reciprocal %28 {approx = true} : vector<1x256xf32> -> vector<1x256xf32>
    %33 = vector.broadcast %32 : vector<1x256xf32> to vector<4x256xf32>
    %34 = arith.mulf %26, %33 : vector<4x256xf32>
    %35 = tpu.iota {dimensions = array<i32: 0>} : vector<4x256xi32>
    %36 = vector.broadcast %21 : vector<1x256xi32> to vector<4x256xi32>
    %37 = arith.cmpi eq, %35, %36 : vector<4x256xi32>
    %38 = vector.broadcast %17 : vector<1x256xi1> to vector<4x256xi1>
    %39 = arith.andi %37, %38 : vector<4x256xi1>
    %40 = arith.extui %39 : vector<4x256xi1> to vector<4x256xi32>
    %41 = arith.sitofp %40 : vector<4x256xi32> to vector<4x256xf32>
    %42 = vector.broadcast %19 : vector<1x256xf32> to vector<4x256xf32>
    %43 = arith.mulf %34, %42 : vector<4x256xf32>
    %c0_9 = arith.constant 0 : index
    %c0_10 = arith.constant 0 : index
    %c0_11 = arith.constant 0 : index
    %44 = vector.load %arg5[%c0_9, %c0_10, %c0_11] : memref<5x4x128xf32, #tpu.memory_space<vmem>>, vector<1x4x128xf32>
    %45 = vector.shape_cast %44 : vector<1x4x128xf32> to vector<4x128xf32>
    %46 = arith.mulf %34, %41 : vector<4x256xf32>
    %47 = vector.extract_strided_slice %46 {offsets = [0, 0], sizes = [4, 128], strides = [1, 1]} : vector<4x256xf32> to vector<4x128xf32>
    %48 = vector.extract_strided_slice %46 {offsets = [0, 128], sizes = [4, 128], strides = [1, 1]} : vector<4x256xf32> to vector<4x128xf32>
    %49 = arith.addf %47, %48 : vector<4x128xf32>
    %50 = arith.addf %45, %49 : vector<4x128xf32>
    %c0_12 = arith.constant 0 : index
    %c0_13 = arith.constant 0 : index
    %c0_14 = arith.constant 0 : index
    %51 = vector.load %arg5[%c0_12, %c0_13, %c0_14] : memref<5x4x128xf32, #tpu.memory_space<vmem>>, vector<1x4x128xf32>
    %52 = vector.shape_cast %51 : vector<1x4x128xf32> to vector<4x128xf32>
    %53 = vector.shape_cast %50 : vector<4x128xf32> to vector<1x4x128xf32>
    tpu.vector_store %arg5[%c0_12, %c0_13, %c0_14], %53 {strides = array<i32>} : memref<5x4x128xf32, #tpu.memory_space<vmem>>, vector<1x4x128xf32>,
    %c1 = arith.constant 1 : index
    %c0_15 = arith.constant 0 : index
    %c0_16 = arith.constant 0 : index
    %54 = vector.load %arg5[%c1, %c0_15, %c0_16] : memref<5x4x128xf32, #tpu.memory_space<vmem>>, vector<1x4x128xf32>
    %55 = vector.shape_cast %54 : vector<1x4x128xf32> to vector<4x128xf32>
    %56 = arith.addf %43, %41 : vector<4x256xf32>
    %57 = vector.extract_strided_slice %56 {offsets = [0, 0], sizes = [4, 128], strides = [1, 1]} : vector<4x256xf32> to vector<4x128xf32>
    %58 = vector.extract_strided_slice %56 {offsets = [0, 128], sizes = [4, 128], strides = [1, 1]} : vector<4x256xf32> to vector<4x128xf32>
    %59 = arith.addf %57, %58 : vector<4x128xf32>
    %60 = arith.addf %55, %59 : vector<4x128xf32>
    %c1_17 = arith.constant 1 : index
    %c0_18 = arith.constant 0 : index
    %c0_19 = arith.constant 0 : index
    %61 = vector.load %arg5[%c1_17, %c0_18, %c0_19] : memref<5x4x128xf32, #tpu.memory_space<vmem>>, vector<1x4x128xf32>
    %62 = vector.shape_cast %61 : vector<1x4x128xf32> to vector<4x128xf32>
    %63 = vector.shape_cast %60 : vector<4x128xf32> to vector<1x4x128xf32>
    tpu.vector_store %arg5[%c1_17, %c0_18, %c0_19], %63 {strides = array<i32>} : memref<5x4x128xf32, #tpu.memory_space<vmem>>, vector<1x4x128xf32>,
    %c2 = arith.constant 2 : index
    %c0_20 = arith.constant 0 : index
    %c0_21 = arith.constant 0 : index
    %64 = vector.load %arg5[%c2, %c0_20, %c0_21] : memref<5x4x128xf32, #tpu.memory_space<vmem>>, vector<1x4x128xf32>
    %65 = vector.shape_cast %64 : vector<1x4x128xf32> to vector<4x128xf32>
    %66 = vector.extract_strided_slice %41 {offsets = [0, 0], sizes = [4, 128], strides = [1, 1]} : vector<4x256xf32> to vector<4x128xf32>
    %67 = vector.extract_strided_slice %41 {offsets = [0, 128], sizes = [4, 128], strides = [1, 1]} : vector<4x256xf32> to vector<4x128xf32>
    %68 = arith.addf %66, %67 : vector<4x128xf32>
    %69 = arith.addf %65, %68 : vector<4x128xf32>
    %c2_22 = arith.constant 2 : index
    %c0_23 = arith.constant 0 : index
    %c0_24 = arith.constant 0 : index
    %70 = vector.load %arg5[%c2_22, %c0_23, %c0_24] : memref<5x4x128xf32, #tpu.memory_space<vmem>>, vector<1x4x128xf32>
    %71 = vector.shape_cast %70 : vector<1x4x128xf32> to vector<4x128xf32>
    %72 = vector.shape_cast %69 : vector<4x128xf32> to vector<1x4x128xf32>
    tpu.vector_store %arg5[%c2_22, %c0_23, %c0_24], %72 {strides = array<i32>} : memref<5x4x128xf32, #tpu.memory_space<vmem>>, vector<1x4x128xf32>,
    %c3 = arith.constant 3 : index
    %c0_25 = arith.constant 0 : index
    %c0_26 = arith.constant 0 : index
    %73 = vector.load %arg5[%c3, %c0_25, %c0_26] : memref<5x4x128xf32, #tpu.memory_space<vmem>>, vector<1x4x128xf32>
    %74 = vector.shape_cast %73 : vector<1x4x128xf32> to vector<4x128xf32>
    %75 = arith.mulf %31, %41 : vector<4x256xf32>
    %76 = vector.extract_strided_slice %75 {offsets = [0, 0], sizes = [4, 128], strides = [1, 1]} : vector<4x256xf32> to vector<4x128xf32>
    %77 = vector.extract_strided_slice %75 {offsets = [0, 128], sizes = [4, 128], strides = [1, 1]} : vector<4x256xf32> to vector<4x128xf32>
    %78 = arith.addf %76, %77 : vector<4x128xf32>
    %79 = arith.addf %74, %78 : vector<4x128xf32>
    %c3_27 = arith.constant 3 : index
    %c0_28 = arith.constant 0 : index
    %c0_29 = arith.constant 0 : index
    %80 = vector.load %arg5[%c3_27, %c0_28, %c0_29] : memref<5x4x128xf32, #tpu.memory_space<vmem>>, vector<1x4x128xf32>
    %81 = vector.shape_cast %80 : vector<1x4x128xf32> to vector<4x128xf32>
    %82 = vector.shape_cast %79 : vector<4x128xf32> to vector<1x4x128xf32>
    tpu.vector_store %arg5[%c3_27, %c0_28, %c0_29], %82 {strides = array<i32>} : memref<5x4x128xf32, #tpu.memory_space<vmem>>, vector<1x4x128xf32>,
    %c4 = arith.constant 4 : index
    %c0_30 = arith.constant 0 : index
    %c0_31 = arith.constant 0 : index
    %83 = vector.load %arg5[%c4, %c0_30, %c0_31] : memref<5x4x128xf32, #tpu.memory_space<vmem>>, vector<1x4x128xf32>
    %84 = vector.shape_cast %83 : vector<1x4x128xf32> to vector<4x128xf32>
    %85 = vector.broadcast %19 : vector<1x256xf32> to vector<4x256xf32>
    %86 = arith.mulf %31, %85 : vector<4x256xf32>
    %87 = vector.extract_strided_slice %86 {offsets = [0, 0], sizes = [4, 128], strides = [1, 1]} : vector<4x256xf32> to vector<4x128xf32>
    %88 = vector.extract_strided_slice %86 {offsets = [0, 128], sizes = [4, 128], strides = [1, 1]} : vector<4x256xf32> to vector<4x128xf32>
    %89 = arith.addf %87, %88 : vector<4x128xf32>
    %90 = arith.addf %84, %89 : vector<4x128xf32>
    %c4_32 = arith.constant 4 : index
    %c0_33 = arith.constant 0 : index
    %c0_34 = arith.constant 0 : index
    %91 = vector.load %arg5[%c4_32, %c0_33, %c0_34] : memref<5x4x128xf32, #tpu.memory_space<vmem>>, vector<1x4x128xf32>
    %92 = vector.shape_cast %91 : vector<1x4x128xf32> to vector<4x128xf32>
    %93 = vector.shape_cast %90 : vector<4x128xf32> to vector<1x4x128xf32>
    tpu.vector_store %arg5[%c4_32, %c0_33, %c0_34], %93 {strides = array<i32>} : memref<5x4x128xf32, #tpu.memory_space<vmem>>, vector<1x4x128xf32>,
    %c1_i32_35 = arith.constant 1 : i32
    %94 = arith.extui %5 : i1 to i32
    %c0_i32_36 = arith.constant 0 : i32
    %95 = arith.cmpi ne, %94, %c0_i32_36 : i32
    scf.if %95 {
      %c0_37 = arith.constant 0 : index
      %c0_38 = arith.constant 0 : index
      %c0_39 = arith.constant 0 : index
      %96 = vector.load %arg5[%c0_37, %c0_38, %c0_39] : memref<5x4x128xf32, #tpu.memory_space<vmem>>, vector<5x4x128xf32>
      %c0_40 = arith.constant 0 : index
      %c0_41 = arith.constant 0 : index
      %c0_42 = arith.constant 0 : index
      %97 = vector.load %arg4[%c0_40, %c0_41, %c0_42] : memref<5x4x128xf32, #tpu.memory_space<vmem>>, vector<5x4x128xf32>
      tpu.vector_store %arg4[%c0_40, %c0_41, %c0_42], %96 {strides = array<i32>} : memref<5x4x128xf32, #tpu.memory_space<vmem>>, vector<5x4x128xf32>,
    } else {
    }
    return
  }
  func.func @transform_0(%arg0: i32, %arg1: i32) -> (i32, i32, i32) {
    %c0_i32 = arith.constant 0 : i32
    %c0_i32_0 = arith.constant 0 : i32
    return %arg0, %c0_i32, %arg1 : i32, i32, i32
  }
  func.func @transform_1(%arg0: i32, %arg1: i32) -> (i32, i32, i32) {
    %c0_i32 = arith.constant 0 : i32
    %c0_i32_0 = arith.constant 0 : i32
    return %arg0, %c0_i32, %arg1 : i32, i32, i32
  }
  func.func @transform_2(%arg0: i32, %arg1: i32) -> (i32, i32, i32) {
    %c0_i32 = arith.constant 0 : i32
    %c0_i32_0 = arith.constant 0 : i32
    %c0_i32_1 = arith.constant 0 : i32
    %c0_i32_2 = arith.constant 0 : i32
    return %c0_i32, %c0_i32_0, %c0_i32_1 : i32, i32, i32
  }
}

</mosaic_0001>

<llo_original>
// kernel: tpu_custom_call.1
$region0: #{tpu_custom_call.1}
  #allocation0 [shape = 'u32[]', space=smem, size = 0x4, offset = 0x4, fixed_abs, tag = 'smem constant byte address 0x4 - core index']
  #allocation1 [shape = 'u32[72,128]{1,0:T(1,128)}', space=vmem, size = 0x9000, scoped, tag = 'internal scratch']
  #allocation2 [shape = 'f32[5,4,128]{2,1,0:T(4,128)}', space=vmem, size = 0x2800, scoped, tag = 'scratch operand']
  %s0 = inlined_call_operand.hbm [shape: f32[2,4,256], index: 0, kind: input, shape index: {}]
  %s1 = inlined_call_operand.hbm [shape: s32[2,1,256], index: 1, kind: input, shape index: {}]
  %s2 = inlined_call_operand.hbm [shape: f32[5,4,128], index: 2, kind: output, shape index: {}]
  %s3 = sld [smem:[#allocation0]]
  $region57: #{tpu_custom_call.1} parent=0
    _
  %s5 = ssub.s32 1, %s3
  %s6 = scalar_select 0, %s5, %s3
  $region1: #{tpu_custom_call.1} parent=0
    #allocation3 [shape = 'u8[8192]{0}', space=vmem, size = 0x2000, scoped, tag = 'input window, operand 0']
    #allocation4 [shape = 's32[2]{0}', space=sflag, size = 0x8, scoped, tag = 'scoped memory for tpu_custom_call.1']
    #allocation5 [shape = 's32[2]{0}', space=sflag, size = 0x8, scoped, tag = 'scoped memory for tpu_custom_call.1']
    #allocation6 [shape = 'u8[2048]{0}', space=vmem, size = 0x800, scoped, tag = 'input window, operand 1']
    #allocation7 [shape = 's32[2]{0}', space=sflag, size = 0x8, scoped, tag = 'scoped memory for tpu_custom_call.1']
    #allocation8 [shape = 'u8[10240]{0}', space=vmem, size = 0x2800, scoped, tag = 'output window, operand 0, single buffered']
    %7 = vsyncpa [#allocation4], 0
    %s8 = scalar_lea.sflag [#allocation4], 1
    %9 = vsyncpa %s8, 0
    %10 = vsyncpa [#allocation7], 0
    %s11 = scalar_lea.sflag [#allocation7], 1
    %12 = vsyncpa %s11, 0
    %13 = vsyncpa [#allocation5], 0
    loop: start=0, step=1, limit=4
    $region2: #{tpu_custom_call.1} parent=1 // loop_pre_header
      _
    $region3: #{tpu_custom_call.1} parent=1 // loop_header
      %s15 = sphi 0, %s19
      %p16 = scmp.ge.s32.totalorder %s15, 4
      %s22 = sphi 0, %s34
      %s23 = sphi 0, %s30
      %s24 = sphi 0, %s22
      %s25 = sphi 0, %s23
      %s26 = sphi 0, %s24
      %s27 = sphi 0, %s25
      %s39 = sphi 0, %s41
      %s42 = sphi 0, %s39
      %s43 = sphi 0, %s42
      %s59 = sphi 0, %s43
      %s67 = sphi 0, %s69
      %s70 = sphi 0, %s67
      %s71 = sphi 0, %s70
      %s87 = sphi 0, %s71
      %s91 = sphi 0, %s91
      %s93 = sphi 0, %s91
      %s94 = sphi 0, %s93
      %s108 = sphi 0, %s94
    $region4: #{tpu_custom_call.1} parent=1 // loop_header_branch
      %18 = sbr.rel (%p16) target = $region8
    $region5: #{tpu_custom_call.1} parent=1 // loop_body
      %s20 = ssub.s32 %s15, 1
      %s21 = ssub.s32 %s15, 2
      %s28 = sadd.s32 1, %s23
      %p29 = scmp.ge.s32.totalorder %s28, 1
      %s30 = scalar_select %p29, 0, %s28
      %s31 = sadd.s32 1, %s22
      %s32 = scalar_select %p29, %s31, %s22
      %p33 = scmp.ge.s32.totalorder %s32, 2
      %s34 = scalar_select %p33, 0, %s32
      %s35 = ssub.s32 %s22, %s34
      %s36 = ssub.s32 %s23, %s30
      %s37 = sor.u32 %s35, %s36
      %p38 = scmp.eq.s32.totalorder %s37, 0
      %s40 = sadd.s32 %s39, 1
      %s41 = scalar_select %p38, %s39, %s40
      %p44 = pneg %p38
      %p45 = scmp.eq.s32.totalorder %s15, 1
      %p46 = por %p44, %p45
      %p47 = scmp.ne.s32.totalorder %s39, %s42
      %p48 = scmp.eq.s32.totalorder %s15, 0
      %p49 = por %p47, %p48
      %p50 = scmp.ne.s32.totalorder %s39, %s42
      %p51 = scmp.eq.s32.totalorder %s20, 1
      %p52 = por %p50, %p51
      %p53 = scmp.ne.s32.totalorder %s42, %s43
      %p54 = scmp.eq.s32.totalorder %s20, 0
      %p55 = por %p53, %p54
      %p56 = scmp.ne.s32.totalorder %s42, %s43
      %p57 = scmp.eq.s32.totalorder %s21, 1
      %p58 = por %p56, %p57
      %p60 = scmp.ne.s32.totalorder %s43, %s59
      %p61 = scmp.eq.s32.totalorder %s21, 0
      %p62 = por %p60, %p61
      %s63 = ssub.s32 %s22, %s34
      %s64 = ssub.s32 %s23, %s30
      %s65 = sor.u32 %s63, %s64
      %p66 = scmp.eq.s32.totalorder %s65, 0
      %s68 = sadd.s32 %s67, 1
      %s69 = scalar_select %p66, %s67, %s68
      %p72 = pneg %p66
      %p73 = scmp.eq.s32.totalorder %s15, 1
      %p74 = por %p72, %p73
      %p75 = scmp.ne.s32.totalorder %s67, %s70
      %p76 = scmp.eq.s32.totalorder %s15, 0
      %p77 = por %p75, %p76
      %p78 = scmp.ne.s32.totalorder %s67, %s70
      %p79 = scmp.eq.s32.totalorder %s20, 1
      %p80 = por %p78, %p79
      %p81 = scmp.ne.s32.totalorder %s70, %s71
      %p82 = scmp.eq.s32.totalorder %s20, 0
      %p83 = por %p81, %p82
      %p84 = scmp.ne.s32.totalorder %s70, %s71
      %p85 = scmp.eq.s32.totalorder %s21, 1
      %p86 = por %p84, %p85
      %p88 = scmp.ne.s32.totalorder %s71, %s87
      %p89 = scmp.eq.s32.totalorder %s21, 0
      %p90 = por %p88, %p89
      %s92 = sadd.s32 %s91, 1
      %p95 = scmp.eq.s32.totalorder %s15, 1
      %p96 = scmp.ne.s32.totalorder %s91, %s93
      %p97 = scmp.eq.s32.totalorder %s15, 0
      %p98 = por %p96, %p97
      %p99 = scmp.ne.s32.totalorder %s91, %s93
      %p100 = scmp.eq.s32.totalorder %s20, 1
      %p101 = por %p99, %p100
      %p102 = scmp.ne.s32.totalorder %s93, %s94
      %p103 = scmp.eq.s32.totalorder %s20, 0
      %p104 = por %p102, %p103
      %p105 = scmp.ne.s32.totalorder %s93, %s94
      %p106 = scmp.eq.s32.totalorder %s21, 1
      %p107 = por %p105, %p106
      %p109 = scmp.ne.s32.totalorder %s94, %s108
      %p110 = scmp.eq.s32.totalorder %s21, 0
      %p111 = por %p109, %p110
      %p112 = scmp.le.s32.totalorder 1, %s15
      %p113 = scmp.lt.s32.totalorder %s15, 3
      %p114 = pnand %p112, %p113
      %p115 = pneg %p114
      // Predicated region
      $region9: #{tpu_custom_call.1} parent=5 // pred_check
        _
      $region10: #{tpu_custom_call.1} parent=5 // pred_check_branch
        %117 = sbr.rel (%p114) target = $region12
      $region11: #{tpu_custom_call.1} parent=5 // pred_region
        %s118 = ssub.s32 %s15, 1
      $region12: #{tpu_custom_call.1} parent=5 // pred_fallthru
        _
      %p119 = scmp.lt.s32.totalorder %s15, 2
      // Predicated region
      $region13: #{tpu_custom_call.1} parent=5 // pred_check
        %p120 = pneg %p119
      $region14: #{tpu_custom_call.1} parent=5 // pred_check_branch
        %122 = sbr.rel (%p120) target = $region16
      $region15: #{tpu_custom_call.1} parent=5 // pred_region
        // Predicated region
        $region17: #{tpu_custom_call.1} parent=15 // pred_check
          %p123 = pneg %p49
        $region18: #{tpu_custom_call.1} parent=15 // pred_check_branch
          %125 = sbr.rel (%p123) target = $region20
        $region19: #{tpu_custom_call.1} parent=15 // pred_region
          %s126 = sand.u32 %s39, 1
          %s127 = scalar_lea.sflag [#allocation4], %s126
          %s128 = sand.u32 %s39, 1
          %s129 = smul.addr %s128, 8
          %s130 = scalar_lea.vmem [#allocation3], %s129
          %s131 = smul.u32 2, %s23
          %133 = vsyncadd %s127, 0
          %s134 = smul.addr %s22, 2
          %s135 = sadd.s32 %s131, %s134
          %s136 = smul.addr %s135, 4
          %s137 = scalar_lea.hbm %s0, %s136
          %s139 = sshll.u32 %s137, 4
          %s140 = int_to_ptr.hbm [resolvable:$true] %s139
          %s141 = sshll.u32 %s130, 4
          %s142 = int_to_ptr.vmem [resolvable:$true] %s141
          %144 = dma.hbm_to_vmem [thread:$0]  %s140, 128, %s142, %s127
        $region20: #{tpu_custom_call.1} parent=15 // pred_fallthru
          _
        // Predicated region
        $region21: #{tpu_custom_call.1} parent=15 // pred_check
          %p145 = pneg %p77
        $region22: #{tpu_custom_call.1} parent=15 // pred_check_branch
          %147 = sbr.rel (%p145) target = $region24
        $region23: #{tpu_custom_call.1} parent=15 // pred_region
          %s148 = sand.u32 %s67, 1
          %s149 = scalar_lea.sflag [#allocation7], %s148
          %s150 = sand.u32 %s67, 1
          %s151 = smul.addr %s150, 2
          %s152 = scalar_lea.vmem [#allocation6], %s151
          %s153 = smul.u32 2, %s23
          %155 = vsyncadd %s149, 0
          %s156 = smul.addr %s22, 2
          %s157 = sadd.s32 %s153, %s156
          %s158 = scalar_lea.hbm %s1, %s157
          %s160 = sshll.u32 %s158, 4
          %s161 = int_to_ptr.hbm [resolvable:$true] %s160
          %s162 = sshll.u32 %s152, 4
          %s163 = int_to_ptr.vmem [resolvable:$true] %s162
          %165 = dma.hbm_to_vmem [thread:$0]  %s161, 32, %s163, %s149
        $region24: #{tpu_custom_call.1} parent=15 // pred_fallthru
          _
      $region16: #{tpu_custom_call.1} parent=5 // pred_fallthru
        _
      %p166 = scmp.le.s32.totalorder 1, %s15
      %p167 = scmp.lt.s32.totalorder %s15, 3
      %p168 = pnand %p166, %p167
      %p169 = pneg %p168
      // Predicated region
      $region25: #{tpu_custom_call.1} parent=5 // pred_check
        _
      $region26: #{tpu_custom_call.1} parent=5 // pred_check_branch
        %171 = sbr.rel (%p168) target = $region28
      $region27: #{tpu_custom_call.1} parent=5 // pred_region
        %s172 = ssub.s32 %s15, 1
        %s173 = sand.u32 %s42, 1
        %s174 = scalar_lea.sflag [#allocation4], %s173
        %s175 = sand.u32 %s42, 1
        %s176 = smul.addr %s175, 8
        %s177 = scalar_lea.vmem [#allocation3], %s176
        // Predicated region
        $region29: #{tpu_custom_call.1} parent=27 // pred_check
          %p178 = pneg %p55
        $region30: #{tpu_custom_call.1} parent=27 // pred_check_branch
          %180 = sbr.rel (%p178) target = $region32
        $region31: #{tpu_custom_call.1} parent=27 // pred_region
          %182 = dma.done %s174, 128
        $region32: #{tpu_custom_call.1} parent=27 // pred_fallthru
          _
        %s183 = sand.u32 %s70, 1
        %s184 = scalar_lea.sflag [#allocation7], %s183
        %s185 = sand.u32 %s70, 1
        %s186 = smul.addr %s185, 2
        %s187 = scalar_lea.vmem [#allocation6], %s186
        // Predicated region
        $region33: #{tpu_custom_call.1} parent=27 // pred_check
          %p188 = pneg %p83
        $region34: #{tpu_custom_call.1} parent=27 // pred_check_branch
          %190 = sbr.rel (%p188) target = $region36
        $region35: #{tpu_custom_call.1} parent=27 // pred_region
          %192 = dma.done %s184, 32
        $region36: #{tpu_custom_call.1} parent=27 // pred_fallthru
          _
        %s193 = sand.u32 %s42, 1
        %s194 = scalar_lea.sflag [#allocation4], %s193
        %s195 = sand.u32 %s42, 1
        %s196 = smul.addr %s195, 8
        %s197 = scalar_lea.vmem [#allocation3], %s196
        %p198 = pneg %p55
        %p199 = pneg %p52
        %s200 = sand.u32 %s70, 1
        %s201 = scalar_lea.sflag [#allocation7], %s200
        %s202 = sand.u32 %s70, 1
        %s203 = smul.addr %s202, 2
        %s204 = scalar_lea.vmem [#allocation6], %s203
        %p205 = pneg %p83
        %p206 = pneg %p80
        %p207 = pneg %p104
        %p208 = pneg %p101
        %s209 = smul.u32 2, %s25
        %s210 = smul.u32 2, %s25
        %p211 = scmp.eq.s32.totalorder %s24, 0
        %p212 = scmp.eq.s32.totalorder %s25, 0
        %p213 = pnand %p211, %p212
        %p214 = pneg %p213
        %p215 = scmp.eq.s32.totalorder %s24, 1
        %p216 = pnand %p215, %p212
        %p217 = pneg %p216
        // Predicated region
        $region37: #{tpu_custom_call.1} parent=27 // pred_check
          _
        $region38: #{tpu_custom_call.1} parent=27 // pred_check_branch
          %219 = sbr.rel (%p213) target = $region40
        $region39: #{tpu_custom_call.1} parent=27 // pred_region
          %220 = vst [vmem:[#allocation2] sm:$0xf] 0.0
          %221 = vst [vmem:[#allocation2 + $0x4] sm:$0xf] 0.0
          %222 = vst [vmem:[#allocation2 + $0x8] sm:$0xf] 0.0
          %223 = vst [vmem:[#allocation2 + $0xc] sm:$0xf] 0.0
          %224 = vst [vmem:[#allocation2 + $0x10] sm:$0xf] 0.0
        $region40: #{tpu_custom_call.1} parent=27 // pred_fallthru
          _
        %v225 = vld [vmem:[%s177] sm:$0xff]
        %v226 = vld [vmem:[%s187] sm:$0x3]
        %vm227 = vcmp.ne.s32.totalorder %v226, 255
        %v228 = vsel %vm227, 1, 0
        %v229 = vcvt.s32.f32 %v228
        %v230 = vsel %vm227, %v226, 0
        %232 = vst [vmem:[#allocation1] ss:$2 sm:$0xff] %v225
        %v233 = vld.sshfl [vmem:[#allocation1] sm:$0xff pattern:$0x75316420]
        %v234 = vld.sshfl [vmem:[#allocation1 + $0x8] sm:$0xff pattern:$0x75316420]
        %vm237 = vcmask 1043456
        %v238 = vsel %vm237, %v233, -inf
        %v239 = vrot.slane %v238, 4
        %v240 = vmax.f32 %v238, %v239
        %v241 = vrot.slane %v240, 2
        %v242 = vmax.f32 %v240, %v241
        %v243 = vrot.slane %v242, 1
        %v244 = vmax.f32 %v242, %v243
        %v245 = vsel %vm237, %v234, -inf
        %v246 = vrot.slane %v245, 4
        %v247 = vmax.f32 %v245, %v246
        %v248 = vrot.slane %v247, 2
        %v249 = vmax.f32 %v247, %v248
        %v250 = vrot.slane %v249, 1
        %v251 = vmax.f32 %v249, %v250
        %v254 = vrot.slane %v251, 4
        %v255 = vsel %vm237, %v244, %v254
        %v257 = vsub.f32 %v225, %v255
        %v258 = vmul.f32 %v257, 1.442695
        %v259 = vpow.pop %v258
        %261 = vst [vmem:[#allocation1] ss:$2 sm:$0xff] %v259
        %v262 = vld.sshfl [vmem:[#allocation1] sm:$0xff pattern:$0x75316420]
        %v263 = vld.sshfl [vmem:[#allocation1 + $0x8] sm:$0xff pattern:$0x75316420]
        %v266 = vsel %vm237, %v262, 0.0
        %v267 = vrot.slane %v266, 4
        %v268 = vadd.f32 %v266, %v267
        %v269 = vrot.slane %v268, 2
        %v270 = vadd.f32 %v268, %v269
        %v271 = vrot.slane %v270, 1
        %v272 = vadd.f32 %v270, %v271
        %v273 = vsel %vm237, %v263, 0.0
        %v274 = vrot.slane %v273, 4
        %v275 = vadd.f32 %v273, %v274
        %v276 = vrot.slane %v275, 2
        %v277 = vadd.f32 %v275, %v276
        %v278 = vrot.slane %v277, 1
        %v279 = vadd.f32 %v277, %v278
        %v280 = vlog2.pop %v272
        %v281 = vmul.f32 %v280, 0.6931472
        %v282 = vlog2.pop %v279
        %v283 = vmul.f32 %v282, 0.6931472
        %v286 = vrot.slane %v283, 4
        %v287 = vsel %vm237, %v281, %v286
        %v289 = vsub.f32 %v257, %v287
        %v290 = vrcp.pop %v272
        %v291 = vrcp.pop %v279
        %v294 = vrot.slane %v291, 4
        %v295 = vsel %vm237, %v290, %v294
        %v297 = vmul.f32 %v259, %v295
        %v298 = vlaneseq
        %v299 = vshrl.u32 %v298, 7
        %v300 = vperm.slane %v230, 0
        %v301 = vperm.slane %v230, 1
        %vm302 = vcmp.eq.s32.totalorder %v299, %v300
        %vm303 = vcmp.eq.s32.totalorder %v299, %v301
        %v304 = vperm.slane %v228, 0
        %v305 = vperm.slane %v228, 1
        %vm306 = vcmp.eq.s32.totalorder %v304, 1
        %vm307 = vcmp.eq.s32.totalorder %v305, 1
        %vm308 = vmand %vm302, %vm306
        %vm309 = vmand %vm303, %vm307
        %v310 = vsel %vm308, 1, 0
        %v311 = vsel %vm309, 1, 0
        %v312 = vcvt.s32.f32 %v310
        %v313 = vcvt.s32.f32 %v311
        %v315 = vperm.slane %v229, 0
        %v316 = vperm.slane %v229, 1
        %v317 = vrot.slane %v316, 4
        %v318 = vsel %vm237, %v315, %v317
        %v320 = vmul.f32 %v297, %v318
        %v321 = vld [vmem:[#allocation2] sm:$0xf]
        %v324 = vrot.slane %v313, 4
        %v325 = vsel %vm237, %v312, %v324
        %v327 = vmul.f32 %v297, %v325
        %v329 = vrot.slane %v327, 4
        %v331 = vadd.f32 %v327, %v329
        %v332 = vadd.f32 %v321, %v331
        %333 = vst [vmem:[#allocation2] sm:$0xf] %v332
        %s334 = scalar_lea.vmem [#allocation2], 4
        %v335 = vld [vmem:[%s334] sm:$0xf]
        %v336 = vadd.f32 %v320, %v325
        %v338 = vrot.slane %v336, 4
        %v340 = vadd.f32 %v336, %v338
        %v341 = vadd.f32 %v335, %v340
        %342 = vst [vmem:[%s334] sm:$0xf] %v341
        %s343 = scalar_lea.vmem [#allocation2], 8
        %v344 = vld [vmem:[%s343] sm:$0xf]
        %v345 = vadd.f32 %v312, %v313
        %v346 = vadd.f32 %v344, %v345
        %347 = vst [vmem:[%s343] sm:$0xf] %v346
        %s348 = scalar_lea.vmem [#allocation2], 12
        %v349 = vld [vmem:[%s348] sm:$0xf]
        %v350 = vmul.f32 %v289, %v325
        %v352 = vrot.slane %v350, 4
        %v354 = vadd.f32 %v350, %v352
        %v355 = vadd.f32 %v349, %v354
        %356 = vst [vmem:[%s348] sm:$0xf] %v355
        %s357 = scalar_lea.vmem [#allocation2], 16
        %v358 = vld [vmem:[%s357] sm:$0xf]
        %v359 = vmul.f32 %v289, %v318
        %v361 = vrot.slane %v359, 4
        %v363 = vadd.f32 %v359, %v361
        %v364 = vadd.f32 %v358, %v363
        %365 = vst [vmem:[%s357] sm:$0xf] %v364
        // Predicated region
        $region41: #{tpu_custom_call.1} parent=27 // pred_check
          _
        $region42: #{tpu_custom_call.1} parent=27 // pred_check_branch
          %367 = sbr.rel (%p216) target = $region44
        $region43: #{tpu_custom_call.1} parent=27 // pred_region
          %v368 = vld [vmem:[#allocation2] sm:$0xf]
          %v369 = vld [vmem:[#allocation2 + $0x4] sm:$0xf]
          %v370 = vld [vmem:[#allocation2 + $0x8] sm:$0xf]
          %v371 = vld [vmem:[#allocation2 + $0xc] sm:$0xf]
          %v372 = vld [vmem:[#allocation2 + $0x10] sm:$0xf]
          %373 = vst [vmem:[#allocation8] sm:$0xf] %v368
          %374 = vst [vmem:[#allocation8 + $0x4] sm:$0xf] %v369
          %375 = vst [vmem:[#allocation8 + $0x8] sm:$0xf] %v370
          %376 = vst [vmem:[#allocation8 + $0xc] sm:$0xf] %v371
          %377 = vst [vmem:[#allocation8 + $0x10] sm:$0xf] %v372
        $region44: #{tpu_custom_call.1} parent=27 // pred_fallthru
          _
        // Predicated region
        $region45: #{tpu_custom_call.1} parent=27 // pred_check
          %p378 = pneg %p101
        $region46: #{tpu_custom_call.1} parent=27 // pred_check_branch
          %380 = sbr.rel (%p378) target = $region48
        $region47: #{tpu_custom_call.1} parent=27 // pred_region
          %382 = vsyncadd [#allocation5], 0
          %s383 = sshll.u32 [#allocation8], 4
          %s384 = int_to_ptr.vmem [resolvable:$true] %s383
          %s385 = sshll.u32 %s2, 4
          %s386 = int_to_ptr.hbm [resolvable:$true] %s385
          %391 = dma.vmem_to_hbm [thread:$0]  %s384, 320, %s386, [#allocation5], 64, 64, 4
        $region48: #{tpu_custom_call.1} parent=27 // pred_fallthru
          _
        // Predicated region
        $region49: #{tpu_custom_call.1} parent=27 // pred_check
          %p392 = pneg %p101
        $region50: #{tpu_custom_call.1} parent=27 // pred_check_branch
          %394 = sbr.rel (%p392) target = $region52
        $region51: #{tpu_custom_call.1} parent=27 // pred_region
          %396 = dma.done [#allocation5], 320
        $region52: #{tpu_custom_call.1} parent=27 // pred_fallthru
          _
      $region28: #{tpu_custom_call.1} parent=5 // pred_fallthru
        _
      %p397 = scmp.le.s32.totalorder 2, %s15
      // Predicated region
      $region53: #{tpu_custom_call.1} parent=5 // pred_check
        %p398 = pneg %p397
      $region54: #{tpu_custom_call.1} parent=5 // pred_check_branch
        %400 = sbr.rel (%p398) target = $region56
      $region55: #{tpu_custom_call.1} parent=5 // pred_region
        %s401 = ssub.s32 %s15, 2
      $region56: #{tpu_custom_call.1} parent=5 // pred_fallthru
        _
    $region6: #{tpu_custom_call.1} parent=1 // loop_footer
      %s19 = sadd.s32 1, %s15
    $region7: #{tpu_custom_call.1} parent=1 // loop_footer_branch
      %14 = sbr.rel target = $region3
    $region8: #{tpu_custom_call.1} parent=1 // loop_exit
      _
    %402 = vsyncpa [#allocation4], 1
    %s403 = scalar_lea.sflag [#allocation4], 1
    %404 = vsyncpa %s403, 1
    %405 = vsyncpa [#allocation7], 1
    %s406 = scalar_lea.sflag [#allocation7], 1
    %407 = vsyncpa %s406, 1
    %408 = vsyncpa [#allocation5], 1
    %s409 = scalar_lea.sflag [#allocation5], 1
    %410 = vsyncpa %s409, 1

</llo_original>
